<compile_context>
chip_gen: v5e
topology: v5e:2x2
jax: 0.10.0
libtpu: 0.0.40
codegen_flags: <defaults>
</compile_context>

<pallas_src>
import functools

import jax
import jax.numpy as jnp
import numpy as np
from jax.experimental import pallas as pl
from jax.experimental.pallas import tpu as pltpu


def _round_up(x, m):
    return (x + m - 1) // m * m


def _pick_batch_tile(B):
    """Small B: one tile (batch rounded to 8).  Large B: target ~8 grid steps,
    tile clamped to [128, 512] so each step moves a few hundred KiB of LHS and
    the grid has >= 2 'parallel' steps (both v7x TensorCores get work)."""
    if B <= 128:
        return _round_up(B, 8)
    return int(min(512, max(128, _round_up(pl.cdiv(B, 8), 8))))


# ----------------------------- Pallas kernel --------------------------------
def _cnn_text_kernel(S_al, x_ref, w_ref, aux_ref, fcw_ref, out_ref):
    """One batch tile: matmul -> fused epilogue -> matmul.

    x_ref   : (bt*S_al, Kc_pad) bf16  wrapper-side im2col windows, zero padded
    w_ref   : (Kc_pad, Cp)      bf16  im2col-packed conv weights (all branches)
    aux_ref : (S_al + 2, Cp)    f32   row 0: conv bias, rows 1..S_al: additive
                                      -1e30 (t, branch) validity mask,
                                      row S_al+1: fc bias
    fcw_ref : (Cp, Cp)          bf16  fc weights (real block at [:n_ks*K, :C])
    out_ref : (bt, Cp)          bf16  lane-dense padded logits
    """
    # Single fused MXU pass for every kernel size / output channel (f32 accum).
    conv = jnp.dot(x_ref[...], w_ref[...], preferred_element_type=jnp.float32)
    rows, Cp = conv.shape
    bt = rows // S_al
    # S_al % 8 == 0 -> this split only regroups whole (8,128) f32 tiles.
    conv = conv.reshape(bt, S_al, Cp)

    aux = aux_ref[...]
    conv_bias = aux[0:1, :]                  # (1, Cp)
    mask_add = aux[1:1 + S_al, :]            # (S_al, Cp)
    fc_bias = aux[1 + S_al:2 + S_al, :]      # (1, Cp)

    # Fused epilogue.  NOTE: the additive -1e30 mask is valid ONLY because it
    # is applied AFTER ReLU (all valid values are >= 0).  Do not reorder.
    pooled = jnp.max(jnp.maximum(conv + conv_bias, 0.0) + mask_add, axis=1)

    # Dropout is identity in eval mode.  Final linear (128-lane padded).
    logits = jnp.dot(pooled.astype(fcw_ref.dtype), fcw_ref[...],
                     preferred_element_type=jnp.float32) + fc_bias
    out_ref[...] = logits.astype(out_ref.dtype)


# ------------------------ one-time parameter packing -------------------------
def prepare_cnn_text_params(params, kernel_sizes):
    """One-time packing of weights for the Pallas kernel (cache the result)."""
    embed = params["embed"]                       # (V, D)
    D = embed.shape[1]
    K = params["conv_w"][0].shape[-1]
    n_ks = len(kernel_sizes)
    C = params["fc_b"].shape[-1]
    kmax = max(kernel_sizes)
    C_conv = n_ks * K
    C_pad = _round_up(max(C_conv, C), 128)
    Kc = kmax * D
    Kc_pad = _round_up(Kc, 256)                   # full MXU depth (v6e/v7x)

    # im2col-packed conv weights: row (j*D + d), branch i occupies lanes i*K:(i+1)*K.
    w_packed = np.zeros((Kc_pad, C_pad), np.float32)
    for i, (k, w) in enumerate(zip(kernel_sizes, params["conv_w"])):
        w_packed[: k * D, i * K:(i + 1) * K] = np.asarray(w).reshape(k * D, K)

    conv_b_full = np.zeros((1, C_pad), np.float32)
    conv_b_full[:, :C_conv] = np.concatenate(
        [np.asarray(b) for b in params["conv_b"]], axis=1)
    fc_b_full = np.zeros((1, C_pad), np.float32)
    fc_b_full[:, :C] = np.asarray(params["fc_b"])

    fcw_packed = np.zeros((C_pad, C_pad), np.float32)
    fcw_packed[:C_conv, :C] = np.asarray(params["fc_w"])

    return {
        "embed_bf16": jnp.asarray(embed, jnp.bfloat16),
        "w_packed": jnp.asarray(w_packed, jnp.bfloat16),
        "conv_b": jnp.asarray(conv_b_full),       # (1, C_pad) f32
        "fc_b": jnp.asarray(fc_b_full),           # (1, C_pad) f32
        "fcw_packed": jnp.asarray(fcw_packed, jnp.bfloat16),
        "kernel_sizes": tuple(int(k) for k in kernel_sizes),
        "D": int(D), "K": int(K), "C": int(C),
        "C_conv": int(C_conv), "C_pad": int(C_pad),
        "kmax": int(kmax), "Kc": int(Kc), "Kc_pad": int(Kc_pad),
    }


# ------------------------------ forward wrapper -------------------------------
def cnn_text_forward(token_ids, prep):
    """token_ids: (B, S) int32.  Returns logits (B, class_num) f32."""
    kernel_sizes = prep["kernel_sizes"]
    D, K, C = prep["D"], prep["K"], prep["C"]
    C_conv, C_pad = prep["C_conv"], prep["C_pad"]
    kmax, Kc, Kc_pad = prep["kmax"], prep["Kc"], prep["Kc_pad"]

    B, S = token_ids.shape
    assert S >= kmax, "seq_len must be >= max(kernel_sizes) for valid conv"
    S_al = _round_up(S, 8)                         # sublane-aligned time axis

    bt = _pick_batch_tile(B)
    n_steps = int(pl.cdiv(B, bt))
    B_pad = n_steps * bt

    # Embedding gather (plain-XLA glue); table already bf16 from prep.
    x = jnp.take(prep["embed_bf16"], token_ids, axis=0)        # (B, S, D) bf16

    # Wrapper-side im2col: pad batch + time tail with zeros, build kmax-shifted
    # windows along lanes, pad contraction to Kc_pad, flatten (batch, time).
    x_p = jnp.pad(x, ((0, B_pad - B), (0, S_al + kmax - 1 - S), (0, 0)))
    win = jnp.concatenate([x_p[:, j:j + S_al, :] for j in range(kmax)], axis=-1)
    lhs = jnp.pad(win, ((0, 0), (0, 0), (0, Kc_pad - Kc)))
    lhs = lhs.reshape(B_pad * S_al, Kc_pad)                    # (B_pad*S_al, Kc_pad)

    # aux: conv bias / time-branch validity mask / fc bias packed into one ref.
    # Invalid (partial or padded) window positions get -1e30 (applied after ReLU).
    mask = np.zeros((S_al, C_pad), np.float32)
    for i, k in enumerate(kernel_sizes):
        mask[S - k + 1:, i * K:(i + 1) * K] = -1e30            # covers t >= S too
    aux = jnp.concatenate([prep["conv_b"], jnp.asarray(mask), prep["fc_b"]], axis=0)

    kernel = functools.partial(_cnn_text_kernel, S_al)
    out = pl.pallas_call(
        kernel,
        out_shape=jax.ShapeDtypeStruct((B_pad, C_pad), jnp.bfloat16),
        grid=(n_steps,),
        in_specs=[
            pl.BlockSpec((bt * S_al, Kc_pad), lambda b: (b, 0)),   # LHS: batch-tiled
            pl.BlockSpec((Kc_pad, C_pad), lambda b: (0, 0)),       # conv W: resident
            pl.BlockSpec((S_al + 2, C_pad), lambda b: (0, 0)),     # aux: resident
            pl.BlockSpec((C_pad, C_pad), lambda b: (0, 0)),        # fc W: resident
        ],
        out_specs=pl.BlockSpec((bt, C_pad), lambda b: (b, 0)),
        compiler_params=pltpu.CompilerParams(
            dimension_semantics=("parallel",),
        ),
    )(lhs, prep["w_packed"], aux, prep["fcw_packed"])

    return out[:B, :C].astype(jnp.float32)


# ------------------------- pure-JAX reference ---------------------------------
def cnn_text_reference(token_ids, params, kernel_sizes, compute_dtype=jnp.float32):
    """Same math as the torch module; compute_dtype=bf16 mirrors the kernel's
    quantization points (f32 accumulation everywhere)."""
    x = jnp.take(params["embed"], token_ids, axis=0).astype(compute_dtype)
    S = x.shape[1]
    feats = []
    for ks, w, b in zip(kernel_sizes, params["conv_w"], params["conv_b"]):
        L = S - ks + 1
        w = w.astype(compute_dtype)
        acc = jnp.zeros((x.shape[0], L, w.shape[-1]), jnp.float32)
        for j in range(ks):
            acc = acc + jnp.einsum("bld,dk->blk", x[:, j:j + L, :], w[j],
                                   preferred_element_type=jnp.float32)
        acc = jnp.maximum(acc + b, 0.0)
        feats.append(jnp.max(acc, axis=1))
    feat = jnp.concatenate(feats, axis=1)
    logits = jnp.dot(feat.astype(compute_dtype),
                     params["fc_w"].astype(compute_dtype),
                     preferred_element_type=jnp.float32) + params["fc_b"]
    return logits


# --------------------------------- main ---------------------------------------
if __name__ == "__main__":
    # Small shapes consistent with the module.
    embed_num = 50       # vocab size
    embed_dim = 32
    kernel_num = 16
    kernel_sizes = [3, 4, 5]
    class_num = 4
    batch, seq_len = 2, 8

    key = jax.random.PRNGKey(0)
    keys = jax.random.split(key, 4 + 2 * len(kernel_sizes))

    params = {
        "embed": 0.1 * jax.random.normal(keys[0], (embed_num, embed_dim), jnp.float32),
        # torch Conv2d weight is (K, 1, k, D); stored here as (k, D, K).
        "conv_w": [
            0.1 * jax.random.normal(keys[1 + i], (k, embed_dim, kernel_num), jnp.float32)
            for i, k in enumerate(kernel_sizes)
        ],
        "conv_b": [
            0.01 * jax.random.normal(
                keys[1 + len(kernel_sizes) + i], (1, kernel_num), jnp.float32
            )
            for i in range(len(kernel_sizes))
        ],
        # torch Linear weight is (class_num, len(ks)*K); stored here transposed.
        "fc_w": 0.1 * jax.random.normal(
            keys[-3], (len(kernel_sizes) * kernel_num, class_num), jnp.float32
        ),
        "fc_b": 0.01 * jax.random.normal(keys[-2], (1, class_num), jnp.float32),
    }

    token_ids = jax.random.randint(keys[-1], (batch, seq_len), 0, embed_num, jnp.int32)

    # One-time parameter packing; cached across forward calls.
    prep = prepare_cnn_text_params(params, kernel_sizes)
    forward = jax.jit(functools.partial(cnn_text_forward, prep=prep))

    out = forward(token_ids)
    out = jax.block_until_ready(out)
    assert out.shape == (batch, class_num)

    # Reference with the same bf16 quantization points (f32 accumulation).
    # Tolerance covers the kernel's bf16 logits writeback (<= ~0.4% rel).
    ref = cnn_text_reference(token_ids, params, kernel_sizes,
                             compute_dtype=jnp.bfloat16)
    assert jnp.allclose(out, ref, atol=1e-2, rtol=1e-2), "mismatch vs reference"

    print("KERNEL_OK")
</pallas_src>

<mosaic_0001>
module attributes {stable_mosaic.version = 11 : i64} {
  func.func @_cnn_text_kernel(%arg0: i32, %arg1: memref<64x256xbf16, #tpu.memory_space<vmem>>, %arg2: memref<256x128xbf16, #tpu.memory_space<vmem>>, %arg3: memref<10x128xf32, #tpu.memory_space<vmem>>, %arg4: memref<128x128xbf16, #tpu.memory_space<vmem>>, %arg5: memref<8x128xbf16, #tpu.memory_space<vmem>>) attributes {dimension_semantics = [#tpu.dimension_semantics<parallel>], iteration_bounds = array<i64: 1>, scalar_prefetch = 0 : i64, scratch_operands = 0 : i64, tpu.core_type = #tpu.core_type<tc>, window_params = [{transform_indices = @transform_0, window_bounds = array<i64: 64, 256>}, {pipeline_mode = #tpu.pipeline_mode<synchronous>, transform_indices = @transform_1, window_bounds = array<i64: 256, 128>}, {pipeline_mode = #tpu.pipeline_mode<synchronous>, transform_indices = @transform_2, window_bounds = array<i64: 10, 128>}, {pipeline_mode = #tpu.pipeline_mode<synchronous>, transform_indices = @transform_3, window_bounds = array<i64: 128, 128>}, {transform_indices = @transform_4, window_bounds = array<i64: 8, 128>}]} {
    %c0 = arith.constant 0 : index
    %c0_0 = arith.constant 0 : index
    %0 = vector.load %arg1[%c0, %c0_0] : memref<64x256xbf16, #tpu.memory_space<vmem>>, vector<64x256xbf16>
    %c0_1 = arith.constant 0 : index
    %c0_2 = arith.constant 0 : index
    %1 = vector.load %arg2[%c0_1, %c0_2] : memref<256x128xbf16, #tpu.memory_space<vmem>>, vector<256x128xbf16>
    %cst = arith.constant dense<0.000000e+00> : vector<64x128xf32>
    %2 = tpu.matmul %0, %1, %cst {dimension_numbers = #tpu.dot_dimension_numbers<[1], [0], [0], [1], [0, 0, 1, 1], [], []>} : vector<64x256xbf16>, vector<256x128xbf16>, vector<64x128xf32> -> vector<64x128xf32>
    %3 = vector.shape_cast %2 : vector<64x128xf32> to vector<8x8x128xf32>
    %c0_3 = arith.constant 0 : index
    %c0_4 = arith.constant 0 : index
    %4 = vector.load %arg3[%c0_3, %c0_4] : memref<10x128xf32, #tpu.memory_space<vmem>>, vector<10x128xf32>
    %5 = vector.extract_strided_slice %4 {offsets = [0, 0], sizes = [1, 128], strides = [1, 1]} : vector<10x128xf32> to vector<1x128xf32>
    %6 = vector.extract_strided_slice %4 {offsets = [1, 0], sizes = [8, 128], strides = [1, 1]} : vector<10x128xf32> to vector<8x128xf32>
    %7 = vector.extract_strided_slice %4 {offsets = [9, 0], sizes = [1, 128], strides = [1, 1]} : vector<10x128xf32> to vector<1x128xf32>
    %8 = vector.shape_cast %5 : vector<1x128xf32> to vector<1x1x128xf32>
    %9 = vector.broadcast %8 : vector<1x1x128xf32> to vector<8x8x128xf32>
    %10 = arith.addf %3, %9 : vector<8x8x128xf32>
    %cst_5 = arith.constant 0.000000e+00 : f32
    %11 = vector.broadcast %cst_5 : f32 to vector<8x8x128xf32>
    %12 = arith.maximumf %10, %11 : vector<8x8x128xf32>
    %13 = vector.shape_cast %6 : vector<8x128xf32> to vector<1x8x128xf32>
    %14 = vector.broadcast %13 : vector<1x8x128xf32> to vector<8x8x128xf32>
    %15 = arith.addf %12, %14 : vector<8x8x128xf32>
    %cst_6 = arith.constant dense<0xFF800000> : vector<8x128xf32>
    %16 = vector.multi_reduction <maximumf>, %15, %cst_6 [1] : vector<8x8x128xf32> to vector<8x128xf32>
    %17 = arith.truncf %16 : vector<8x128xf32> to vector<8x128xbf16>
    %c0_7 = arith.constant 0 : index
    %c0_8 = arith.constant 0 : index
    %18 = vector.load %arg4[%c0_7, %c0_8] : memref<128x128xbf16, #tpu.memory_space<vmem>>, vector<128x128xbf16>
    %cst_9 = arith.constant dense<0.000000e+00> : vector<8x128xf32>
    %19 = tpu.matmul %17, %18, %cst_9 {dimension_numbers = #tpu.dot_dimension_numbers<[1], [0], [0], [1], [0, 0, 1, 1], [], []>} : vector<8x128xbf16>, vector<128x128xbf16>, vector<8x128xf32> -> vector<8x128xf32>
    %20 = vector.broadcast %7 : vector<1x128xf32> to vector<8x128xf32>
    %21 = arith.addf %19, %20 : vector<8x128xf32>
    %22 = arith.truncf %21 : vector<8x128xf32> to vector<8x128xbf16>
    %c0_10 = arith.constant 0 : index
    %c0_11 = arith.constant 0 : index
    %23 = vector.load %arg5[%c0_10, %c0_11] : memref<8x128xbf16, #tpu.memory_space<vmem>>, vector<8x128xbf16>
    tpu.vector_store %arg5[%c0_10, %c0_11], %22 {strides = array<i32>} : memref<8x128xbf16, #tpu.memory_space<vmem>>, vector<8x128xbf16>,
    return
  }
  func.func @transform_0(%arg0: i32) -> (i32, i32) {
    %c0_i32 = arith.constant 0 : i32
    %c0_i32_0 = arith.constant 0 : i32
    return %arg0, %c0_i32 : i32, i32
  }
  func.func @transform_1(%arg0: i32) -> (i32, i32) {
    %c0_i32 = arith.constant 0 : i32
    %c0_i32_0 = arith.constant 0 : i32
    %c0_i32_1 = arith.constant 0 : i32
    return %c0_i32, %c0_i32_0 : i32, i32
  }
  func.func @transform_2(%arg0: i32) -> (i32, i32) {
    %c0_i32 = arith.constant 0 : i32
    %c0_i32_0 = arith.constant 0 : i32
    %c0_i32_1 = arith.constant 0 : i32
    return %c0_i32, %c0_i32_0 : i32, i32
  }
  func.func @transform_3(%arg0: i32) -> (i32, i32) {
    %c0_i32 = arith.constant 0 : i32
    %c0_i32_0 = arith.constant 0 : i32
    %c0_i32_1 = arith.constant 0 : i32
    return %c0_i32, %c0_i32_0 : i32, i32
  }
  func.func @transform_4(%arg0: i32) -> (i32, i32) {
    %c0_i32 = arith.constant 0 : i32
    %c0_i32_0 = arith.constant 0 : i32
    return %arg0, %c0_i32 : i32, i32
  }
}

</mosaic_0001>

<llo_original>
// kernel: cnn_text_forward.1
$region0: #{cnn_text_forward.1}
  #allocation0 [shape = 'u32[]', space=smem, size = 0x4, offset = 0x4, fixed_abs, tag = 'smem constant byte address 0x4 - core index']
  #allocation1 [shape = 'u32[72,128]{1,0:T(1,128)}', space=vmem, size = 0x9000, scoped, tag = 'internal scratch']
  %s0 = inlined_call_operand.vmem [shape: bf16[64,256], index: 0, kind: input, shape index: {}]
  %s1 = inlined_call_operand.vmem [shape: bf16[256,128], index: 1, kind: input, shape index: {}]
  %s2 = inlined_call_operand.vmem [shape: f32[10,128], index: 2, kind: input, shape index: {}]
  %s3 = inlined_call_operand.vmem [shape: bf16[128,128], index: 3, kind: input, shape index: {}]
  %s4 = inlined_call_operand.vmem [shape: bf16[8,128], index: 4, kind: output, shape index: {}]
  %s5 = sld [smem:[#allocation0]]
  $region26: #{cnn_text_forward.1} parent=0
    _
  %s7 = ssub.s32 1, %s5
  %s8 = scalar_select 0, %s7, %s5
  // Predicated region
  $region2: #{cnn_text_forward.1} parent=0 // pred_check
    _
  $region3: #{cnn_text_forward.1} parent=0 // pred_check_branch
    %10 = sbr.rel (0) target = $region5
  $region4: #{cnn_text_forward.1} parent=0 // pred_region
    _
  $region5: #{cnn_text_forward.1} parent=0 // pred_fallthru
    _
  // Predicated region
  $region6: #{cnn_text_forward.1} parent=0 // pred_check
    _
  $region7: #{cnn_text_forward.1} parent=0 // pred_check_branch
    %12 = sbr.rel (0) target = $region9
  $region8: #{cnn_text_forward.1} parent=0 // pred_region
    _
  $region9: #{cnn_text_forward.1} parent=0 // pred_fallthru
    _
  // Predicated region
  $region10: #{cnn_text_forward.1} parent=0 // pred_check
    _
  $region11: #{cnn_text_forward.1} parent=0 // pred_check_branch
    %14 = sbr.rel (0) target = $region13
  $region12: #{cnn_text_forward.1} parent=0 // pred_region
    _
  $region13: #{cnn_text_forward.1} parent=0 // pred_fallthru
    _
  // Predicated region
  $region14: #{cnn_text_forward.1} parent=0 // pred_check
    _
  $region15: #{cnn_text_forward.1} parent=0 // pred_check_branch
    %16 = sbr.rel (0) target = $region17
  $region16: #{cnn_text_forward.1} parent=0 // pred_region
    _
  $region17: #{cnn_text_forward.1} parent=0 // pred_fallthru
    _
  %v17 = vld [vmem:[%s0] sm:$0xff]
  %v18 = vld [vmem:[%s0 + $0x8] sm:$0xff]
  %v19 = vld [vmem:[%s0 + $0x10] sm:$0xff]
  %v20 = vld [vmem:[%s0 + $0x18] sm:$0xff]
  %v21 = vld [vmem:[%s0 + $0x20] sm:$0xff]
  %v22 = vld [vmem:[%s0 + $0x28] sm:$0xff]
  %v23 = vld [vmem:[%s0 + $0x30] sm:$0xff]
  %v24 = vld [vmem:[%s0 + $0x38] sm:$0xff]
  %v25 = vld [vmem:[%s1] sm:$0xf]
  %v26 = vld [vmem:[%s1 + $0x4] sm:$0xf]
  %v27 = vld [vmem:[%s1 + $0x8] sm:$0xf]
  %v28 = vld [vmem:[%s1 + $0xc] sm:$0xf]
  %v29 = vld [vmem:[%s1 + $0x10] sm:$0xf]
  %v30 = vld [vmem:[%s1 + $0x14] sm:$0xf]
  %v31 = vld [vmem:[%s1 + $0x18] sm:$0xf]
  %v32 = vld [vmem:[%s1 + $0x1c] sm:$0xf]
  %v33 = vld [vmem:[%s1 + $0x20] sm:$0xf]
  %v34 = vld [vmem:[%s1 + $0x24] sm:$0xf]
  %v35 = vld [vmem:[%s1 + $0x28] sm:$0xf]
  %v36 = vld [vmem:[%s1 + $0x2c] sm:$0xf]
  %v37 = vld [vmem:[%s1 + $0x30] sm:$0xf]
  %v38 = vld [vmem:[%s1 + $0x34] sm:$0xf]
  %v39 = vld [vmem:[%s1 + $0x38] sm:$0xf]
  %v40 = vld [vmem:[%s1 + $0x3c] sm:$0xf]
  %v41 = vld [vmem:[%s1 + $0x40] sm:$0xf]
  %v42 = vld [vmem:[%s1 + $0x44] sm:$0xf]
  %v43 = vld [vmem:[%s1 + $0x48] sm:$0xf]
  %v44 = vld [vmem:[%s1 + $0x4c] sm:$0xf]
  %v45 = vld [vmem:[%s1 + $0x50] sm:$0xf]
  %v46 = vld [vmem:[%s1 + $0x54] sm:$0xf]
  %v47 = vld [vmem:[%s1 + $0x58] sm:$0xf]
  %v48 = vld [vmem:[%s1 + $0x5c] sm:$0xf]
  %v49 = vld [vmem:[%s1 + $0x60] sm:$0xf]
  %v50 = vld [vmem:[%s1 + $0x64] sm:$0xf]
  %v51 = vld [vmem:[%s1 + $0x68] sm:$0xf]
  %v52 = vld [vmem:[%s1 + $0x6c] sm:$0xf]
  %v53 = vld [vmem:[%s1 + $0x70] sm:$0xf]
  %v54 = vld [vmem:[%s1 + $0x74] sm:$0xf]
  %v55 = vld [vmem:[%s1 + $0x78] sm:$0xf]
  %v56 = vld [vmem:[%s1 + $0x7c] sm:$0xf]
  %v65 = vunpack.c.l.b16 %v17
  %v66 = vunpack.c.h.b16 %v17
  %v67 = vunpack.c.l.b16 %v18
  %v68 = vunpack.c.h.b16 %v18
  %v69 = vunpack.c.l.b16 %v19
  %v70 = vunpack.c.h.b16 %v19
  %v71 = vunpack.c.l.b16 %v20
  %v72 = vunpack.c.h.b16 %v20
  %v73 = vunpack.c.l.b16 %v21
  %v74 = vunpack.c.h.b16 %v21
  %v75 = vunpack.c.l.b16 %v22
  %v76 = vunpack.c.h.b16 %v22
  %v77 = vunpack.c.l.b16 %v23
  %v78 = vunpack.c.h.b16 %v23
  %v79 = vunpack.c.l.b16 %v24
  %v80 = vunpack.c.h.b16 %v24
  %v81 = vpack.c.b16 %v67, %v65
  %v82 = vpack.c.b16 %v68, %v66
  %v83 = vpack.c.b16 %v71, %v69
  %v84 = vpack.c.b16 %v72, %v70
  %v85 = vpack.c.b16 %v75, %v73
  %v86 = vpack.c.b16 %v76, %v74
  %v87 = vpack.c.b16 %v79, %v77
  %v88 = vpack.c.b16 %v80, %v78
  %v129 = vunpack.c.l.b16 %v25
  %v130 = vunpack.c.l.b16 %v26
  %v131 = vunpack.c.l.b16 %v27
  %v132 = vunpack.c.l.b16 %v28
  %v133 = vunpack.c.l.b16 %v29
  %v134 = vunpack.c.l.b16 %v30
  %v135 = vunpack.c.l.b16 %v31
  %v136 = vunpack.c.l.b16 %v32
  %v137 = vunpack.c.l.b16 %v33
  %v138 = vunpack.c.l.b16 %v34
  %v139 = vunpack.c.l.b16 %v35
  %v140 = vunpack.c.l.b16 %v36
  %v141 = vunpack.c.l.b16 %v37
  %v142 = vunpack.c.l.b16 %v38
  %v143 = vunpack.c.l.b16 %v39
  %v144 = vunpack.c.l.b16 %v40
  %v145 = vunpack.c.l.b16 %v41
  %v146 = vunpack.c.l.b16 %v42
  %v147 = vunpack.c.l.b16 %v43
  %v148 = vunpack.c.l.b16 %v44
  %v149 = vunpack.c.l.b16 %v45
  %v150 = vunpack.c.l.b16 %v46
  %v151 = vunpack.c.l.b16 %v47
  %v152 = vunpack.c.l.b16 %v48
  %v153 = vunpack.c.l.b16 %v49
  %v154 = vunpack.c.l.b16 %v50
  %v155 = vunpack.c.l.b16 %v51
  %v156 = vunpack.c.l.b16 %v52
  %v157 = vunpack.c.l.b16 %v53
  %v158 = vunpack.c.l.b16 %v54
  %v159 = vunpack.c.l.b16 %v55
  %v160 = vunpack.c.l.b16 %v56
  %v161 = vpack.c.b16 %v130, %v129
  %v162 = vpack.c.b16 %v132, %v131
  %v163 = vpack.c.b16 %v134, %v133
  %v164 = vpack.c.b16 %v136, %v135
  %v165 = vpack.c.b16 %v138, %v137
  %v166 = vpack.c.b16 %v140, %v139
  %v167 = vpack.c.b16 %v142, %v141
  %v168 = vpack.c.b16 %v144, %v143
  %v169 = vpack.c.b16 %v146, %v145
  %v170 = vpack.c.b16 %v148, %v147
  %v171 = vpack.c.b16 %v150, %v149
  %v172 = vpack.c.b16 %v152, %v151
  %v173 = vpack.c.b16 %v154, %v153
  %v174 = vpack.c.b16 %v156, %v155
  %v175 = vpack.c.b16 %v158, %v157
  %v176 = vpack.c.b16 %v160, %v159
  %193 = vmatpush.bf16.msra.mxu0 %v168
  %194 = vmatpush.bf16.msra.mxu0 %v167
  %195 = vmatpush.bf16.msra.mxu0 %v166
  %196 = vmatpush.bf16.msra.mxu0 %v165
  %197 = vmatpush.bf16.msra.mxu0 %v164
  %198 = vmatpush.bf16.msra.mxu0 %v163
  %199 = vmatpush.bf16.msra.mxu0 %v162
  %200 = vmatpush.bf16.msra.mxu0 %v161
  %201 = vmatmul.bf16.gmra.mxu0 %v81
  %v202 = vpop.f32.mrf.mxu0
  %v203 = vadd.f32 0.0, %v202
  %v204 = vpop.f32.mrf.mxu0
  %v205 = vadd.f32 0.0, %v204
  %206 = vmatmul.bf16.gmra.mxu0 %v83
  %v207 = vpop.f32.mrf.mxu0
  %v208 = vadd.f32 0.0, %v207
  %v209 = vpop.f32.mrf.mxu0
  %v210 = vadd.f32 0.0, %v209
  %211 = vmatmul.bf16.gmra.mxu0 %v85
  %v212 = vpop.f32.mrf.mxu0
  %v213 = vadd.f32 0.0, %v212
  %v214 = vpop.f32.mrf.mxu0
  %v215 = vadd.f32 0.0, %v214
  %216 = vmatmul.bf16.gmra.mxu0 %v87
  %v217 = vpop.f32.mrf.mxu0
  %v218 = vadd.f32 0.0, %v217
  %v219 = vpop.f32.mrf.mxu0
  %v220 = vadd.f32 0.0, %v219
  %221 = vdwg.mxu0
  %222 = vmatpush.bf16.msra.mxu0 %v176
  %223 = vmatpush.bf16.msra.mxu0 %v175
  %224 = vmatpush.bf16.msra.mxu0 %v174
  %225 = vmatpush.bf16.msra.mxu0 %v173
  %226 = vmatpush.bf16.msra.mxu0 %v172
  %227 = vmatpush.bf16.msra.mxu0 %v171
  %228 = vmatpush.bf16.msra.mxu0 %v170
  %229 = vmatpush.bf16.msra.mxu0 %v169
  %230 = vmatmul.bf16.gmra.mxu0 %v82
  %v231 = vpop.f32.mrf.mxu0
  %v232 = vadd.f32 %v203, %v231
  %v233 = vpop.f32.mrf.mxu0
  %v234 = vadd.f32 %v205, %v233
  %235 = vmatmul.bf16.gmra.mxu0 %v84
  %v236 = vpop.f32.mrf.mxu0
  %v237 = vadd.f32 %v208, %v236
  %v238 = vpop.f32.mrf.mxu0
  %v239 = vadd.f32 %v210, %v238
  %240 = vmatmul.bf16.gmra.mxu0 %v86
  %v241 = vpop.f32.mrf.mxu0
  %v242 = vadd.f32 %v213, %v241
  %v243 = vpop.f32.mrf.mxu0
  %v244 = vadd.f32 %v215, %v243
  %245 = vmatmul.bf16.gmra.mxu0 %v88
  %v246 = vpop.f32.mrf.mxu0
  %v247 = vadd.f32 %v218, %v246
  %v248 = vpop.f32.mrf.mxu0
  %v249 = vadd.f32 %v220, %v248
  %250 = vdwg.mxu0
  %v251 = vld [vmem:[%s2] sm:$0xff]
  %v252 = vld [vmem:[%s2 + $0x8] sm:$0x3]
  %v253 = vperm.slane %v251, 0
  %v254 = vadd.f32 %v232, %v253
  %v255 = vadd.f32 %v234, %v253
  %v256 = vadd.f32 %v237, %v253
  %v257 = vadd.f32 %v239, %v253
  %v258 = vadd.f32 %v242, %v253
  %v259 = vadd.f32 %v244, %v253
  %v260 = vadd.f32 %v247, %v253
  %v261 = vadd.f32 %v249, %v253
  %v262 = vmax.f32 %v254, 0.0
  %v263 = vmax.f32 %v255, 0.0
  %v264 = vmax.f32 %v256, 0.0
  %v265 = vmax.f32 %v257, 0.0
  %v266 = vmax.f32 %v258, 0.0
  %v267 = vmax.f32 %v259, 0.0
  %v268 = vmax.f32 %v260, 0.0
  %v269 = vmax.f32 %v261, 0.0
  %vm272 = vcmask 1046528
  %v273 = vrot.slane %v251, 1
  %v274 = vrot.slane %v252, 1
  %v275 = vsel %vm272, %v273, %v274
  %v277 = vadd.f32 %v262, %v275
  %v278 = vadd.f32 %v263, %v275
  %v279 = vadd.f32 %v264, %v275
  %v280 = vadd.f32 %v265, %v275
  %v281 = vadd.f32 %v266, %v275
  %v282 = vadd.f32 %v267, %v275
  %v283 = vadd.f32 %v268, %v275
  %v284 = vadd.f32 %v269, %v275
  %v285 = vrot.slane %v277, 4
  %v286 = vmax.f32 %v277, %v285
  %v287 = vrot.slane %v286, 2
  %v288 = vmax.f32 %v286, %v287
  %v289 = vrot.slane %v288, 1
  %v290 = vmax.f32 %v288, %v289
  %v291 = vrot.slane %v278, 4
  %v292 = vmax.f32 %v278, %v291
  %v293 = vrot.slane %v292, 2
  %v294 = vmax.f32 %v292, %v293
  %v295 = vrot.slane %v294, 1
  %v296 = vmax.f32 %v294, %v295
  %v297 = vrot.slane %v279, 4
  %v298 = vmax.f32 %v279, %v297
  %v299 = vrot.slane %v298, 2
  %v300 = vmax.f32 %v298, %v299
  %v301 = vrot.slane %v300, 1
  %v302 = vmax.f32 %v300, %v301
  %v303 = vrot.slane %v280, 4
  %v304 = vmax.f32 %v280, %v303
  %v305 = vrot.slane %v304, 2
  %v306 = vmax.f32 %v304, %v305
  %v307 = vrot.slane %v306, 1
  %v308 = vmax.f32 %v306, %v307
  %v309 = vrot.slane %v281, 4
  %v310 = vmax.f32 %v281, %v309
  %v311 = vrot.slane %v310, 2
  %v312 = vmax.f32 %v310, %v311
  %v313 = vrot.slane %v312, 1
  %v314 = vmax.f32 %v312, %v313
  %v315 = vrot.slane %v282, 4
  %v316 = vmax.f32 %v282, %v315
  %v317 = vrot.slane %v316, 2
  %v318 = vmax.f32 %v316, %v317
  %v319 = vrot.slane %v318, 1
  %v320 = vmax.f32 %v318, %v319
  %v321 = vrot.slane %v283, 4
  %v322 = vmax.f32 %v283, %v321
  %v323 = vrot.slane %v322, 2
  %v324 = vmax.f32 %v322, %v323
  %v325 = vrot.slane %v324, 1
  %v326 = vmax.f32 %v324, %v325
  %v327 = vrot.slane %v284, 4
  %v328 = vmax.f32 %v284, %v327
  %v329 = vrot.slane %v328, 2
  %v330 = vmax.f32 %v328, %v329
  %v331 = vrot.slane %v330, 1
  %v332 = vmax.f32 %v330, %v331
  %v333 = vpack.c.bf16 %v290, %v290
  %v334 = vpack.c.bf16 %v296, %v296
  %v335 = vpack.c.bf16 %v302, %v302
  %v336 = vpack.c.bf16 %v308, %v308
  %v337 = vpack.c.bf16 %v314, %v314
  %v338 = vpack.c.bf16 %v320, %v320
  %v339 = vpack.c.bf16 %v326, %v326
  %v340 = vpack.c.bf16 %v332, %v332
  %v341 = vld [vmem:[%s3] sm:$0xf]
  %v342 = vld [vmem:[%s3 + $0x4] sm:$0xf]
  %v343 = vld [vmem:[%s3 + $0x8] sm:$0xf]
  %v344 = vld [vmem:[%s3 + $0xc] sm:$0xf]
  %v345 = vld [vmem:[%s3 + $0x10] sm:$0xf]
  %v346 = vld [vmem:[%s3 + $0x14] sm:$0xf]
  %v347 = vld [vmem:[%s3 + $0x18] sm:$0xf]
  %v348 = vld [vmem:[%s3 + $0x1c] sm:$0xf]
  %v349 = vld [vmem:[%s3 + $0x20] sm:$0xf]
  %v350 = vld [vmem:[%s3 + $0x24] sm:$0xf]
  %v351 = vld [vmem:[%s3 + $0x28] sm:$0xf]
  %v352 = vld [vmem:[%s3 + $0x2c] sm:$0xf]
  %v353 = vld [vmem:[%s3 + $0x30] sm:$0xf]
  %v354 = vld [vmem:[%s3 + $0x34] sm:$0xf]
  %v355 = vld [vmem:[%s3 + $0x38] sm:$0xf]
  %v356 = vld [vmem:[%s3 + $0x3c] sm:$0xf]
  %v357 = vperm.slane %v252, 1
  %v366 = vunpack.c.l.b16 %v333
  %v367 = vunpack.c.l.b16 %v334
  %v368 = vunpack.c.l.b16 %v335
  %v369 = vunpack.c.l.b16 %v336
  %v370 = vunpack.c.l.b16 %v337
  %v371 = vunpack.c.l.b16 %v338
  %v372 = vunpack.c.l.b16 %v339
  %v373 = vunpack.c.l.b16 %v340
  %vm374 = vcmask 1041409
  %v375 = vsel %vm374, %v367, %v366
  %vm376 = vcmask 1042434
  %v377 = vsel %vm376, %v368, %v375
  %vm378 = vcmask 1043459
  %v379 = vsel %vm378, %v369, %v377
  %vm380 = vcmask 1044484
  %v381 = vsel %vm380, %v370, %v379
  %vm382 = vcmask 1045509
  %v383 = vsel %vm382, %v371, %v381
  %vm384 = vcmask 1046534
  %v385 = vsel %vm384, %v372, %v383
  %vm386 = vcmask 1047559
  %v387 = vsel %vm386, %v373, %v385
  %v388 = vpack.c.b16 %v387, %v387
  %v406 = vunpack.c.l.b16 %v341
  %v407 = vunpack.c.l.b16 %v342
  %v408 = vunpack.c.l.b16 %v343
  %v409 = vunpack.c.l.b16 %v344
  %v410 = vunpack.c.l.b16 %v345
  %v411 = vunpack.c.l.b16 %v346
  %v412 = vunpack.c.l.b16 %v347
  %v413 = vunpack.c.l.b16 %v348
  %v414 = vunpack.c.l.b16 %v349
  %v415 = vunpack.c.l.b16 %v350
  %v416 = vunpack.c.l.b16 %v351
  %v417 = vunpack.c.l.b16 %v352
  %v418 = vunpack.c.l.b16 %v353
  %v419 = vunpack.c.l.b16 %v354
  %v420 = vunpack.c.l.b16 %v355
  %v421 = vunpack.c.l.b16 %v356
  %v422 = vpack.c.b16 %v407, %v406
  %v423 = vpack.c.b16 %v409, %v408
  %v424 = vpack.c.b16 %v411, %v410
  %v425 = vpack.c.b16 %v413, %v412
  %v426 = vpack.c.b16 %v415, %v414
  %v427 = vpack.c.b16 %v417, %v416
  %v428 = vpack.c.b16 %v419, %v418
  %v429 = vpack.c.b16 %v421, %v420
  %438 = vmatpush.bf16.msra.mxu0 %v429
  %439 = vmatpush.bf16.msra.mxu0 %v428
  %440 = vmatpush.bf16.msra.mxu0 %v427
  %441 = vmatpush.bf16.msra.mxu0 %v426
  %442 = vmatpush.bf16.msra.mxu0 %v425
  %443 = vmatpush.bf16.msra.mxu0 %v424
  %444 = vmatpush.bf16.msra.mxu0 %v423
  %445 = vmatpush.bf16.msra.mxu0 %v422
  %446 = vmatmul.bf16.gmra.mxu0 %v388
  %v447 = vpop.f32.mrf.mxu0
  %v448 = vadd.f32 %v357, %v447
  %v449 = vpop.f32.mrf.mxu0
  %450 = vdwg.mxu0
  %v451 = vpack.c.bf16 %v448, %v448
  %452 = vst [vmem:[%s4] sm:$0xf] %v451
  // Predicated region
  $region18: #{cnn_text_forward.1} parent=0 // pred_check
    _
  $region19: #{cnn_text_forward.1} parent=0 // pred_check_branch
    %454 = sbr.rel (0) target = $region21
  $region20: #{cnn_text_forward.1} parent=0 // pred_region
    _
  $region21: #{cnn_text_forward.1} parent=0 // pred_fallthru
    _
  // Predicated region
  $region22: #{cnn_text_forward.1} parent=0 // pred_check
    _
  $region23: #{cnn_text_forward.1} parent=0 // pred_check_branch
    %456 = sbr.rel (0) target = $region25
  $region24: #{cnn_text_forward.1} parent=0 // pred_region
    _
  $region25: #{cnn_text_forward.1} parent=0 // pred_fallthru
    _

</llo_original>
